<compile_context>
chip_gen: v6e
topology: v6e:2x2x1
jax: 0.10.0
libtpu: 0.0.40
codegen_flags: <defaults>
</compile_context>

<pallas_src>
import functools
import math

import jax
import jax.numpy as jnp
from jax import lax
from jax.experimental import pallas as pl
from jax.experimental.pallas import tpu as pltpu

_SUBLANES = 8
_LANES = 128


def sig5_sigma_kernel(s_ref, sigma_ref, w_ref, *, n_frames, clip_min, clip_max):
    """sig5 time prior: sigma[t, j] and exp(-sigma[t, j]) from the (5, J) table."""
    s1 = s_ref[0:1, :]
    s2 = s_ref[1:2, :]
    s3 = s_ref[2:3, :]
    s4 = s_ref[3:4, :]
    s5 = s_ref[4:5, :]
    n_joints = s_ref.shape[1]
    # frame index x[t, j] = t
    x = lax.broadcasted_iota(jnp.int32, (n_frames, n_joints), 0).astype(jnp.float32)
    c = 2.0 * s3 * s5 / jnp.abs(s3 + s5)
    f = 1.0 / (1.0 + jnp.exp(-c * (s4 - x)))
    g = jnp.exp(s3 * (s4 - x))
    h = jnp.exp(s5 * (s4 - x))
    sigma = s1 + s2 / (1.0 + f * g + (1.0 - f) * h)
    sigma = jnp.clip(sigma, clip_min, clip_max)
    sigma_ref[...] = sigma
    w_ref[...] = jnp.exp(-sigma)


def pua_block_kernel(w_ref, pred_ref, true_ref, psum_ref, *, n_coord, lanes_per_block):
    """Per-block weighted L2 partial sums.

    w_ref:    (1, 1, LB)  exp(-sigma) tiled over the block's batch rows
    pred_ref: (1, C, LB)  lane-dense: lane = b_local*T*J + t*J + j, sublane = C
    true_ref: (1, C, LB)
    psum_ref: (1, 8, 128) lane-dense partial-sum tile (row 0 holds the data)
    """
    p = pred_ref[...].astype(jnp.float32)
    t = true_ref[...].astype(jnp.float32)
    d = p - t
    d2 = d * d
    # L2 norm over the coordinate axis: unrolled sublane-row sum (pure VPU,
    # no cross-lane XLU reduce).
    lsq = d2[:, 0:1, :]
    for c in range(1, n_coord):
        lsq = lsq + d2[:, c:c + 1, :]
    term = w_ref[...] * jnp.sqrt(lsq)                      # (1, 1, LB), lane-dense
    # Fold LB lanes into one 128-lane row of partials using vreg-aligned
    # static slices + adds (no reshape across the lane axis).
    n_chunks = lanes_per_block // _LANES
    row = term[:, :, 0:_LANES]
    for i in range(1, n_chunks):
        row = row + term[:, :, i * _LANES:(i + 1) * _LANES]
    # Emit a full, zero-padded (8, 128) tile so the store is an unmasked,
    # lane-dense vst and the whole output block is well defined.
    sub = lax.broadcasted_iota(jnp.int32, (1, _SUBLANES, _LANES), 1)
    psum_ref[...] = jnp.where(sub == 0, row, 0.0)


def pua_loss(pred_pose, future_pose, sigma_param, *, nT, nJ,
             clip_min=-100.0, clip_max=100.0, block_batch=None):
    """JAX/Pallas version of PUALoss.forward for tasks='TJ', time_prior='sig5'."""
    B, T, JC = pred_pose.shape
    assert T == nT and JC % nJ == 0, (
        "Either number of predicted frames (nT) is not right, or "
        "number of joints * dim of each joint is not dividable by nJ")
    J = nJ
    C = JC // J
    n_tj = T * J

    # ---- sig5 time prior, computed ONCE per forward in its own tiny kernel ----
    s = sigma_param.reshape(5, J).astype(jnp.float32)
    sigma, w = pl.pallas_call(
        functools.partial(sig5_sigma_kernel, n_frames=T,
                          clip_min=clip_min, clip_max=clip_max),
        out_shape=(jax.ShapeDtypeStruct((T, J), jnp.float32),
                   jax.ShapeDtypeStruct((T, J), jnp.float32)),
        in_specs=[pl.BlockSpec(memory_space=pltpu.MemorySpace.VMEM)],
        out_specs=[pl.BlockSpec(memory_space=pltpu.MemorySpace.VMEM),
                   pl.BlockSpec(memory_space=pltpu.MemorySpace.VMEM)],
    )(s)

    # ---- batch blocking: lanes per block must be a multiple of 8*128 ----
    tile = _SUBLANES * _LANES
    tb0 = tile // math.gcd(n_tj, tile)                 # smallest valid batch block
    elt_bytes = 4
    if block_batch is None:
        # ~2 MiB per input block: 2 inputs x double-buffering fits easily in
        # v7x's 64 MiB VMEM; v5e/v6e (128 MiB) could take ~2x larger blocks.
        tb_target = max(tb0, ((2 << 20) // (C * n_tj * elt_bytes)) // tb0 * tb0)
    else:
        tb_target = -(-block_batch // tb0) * tb0
    b_ceil = -(-B // tb0) * tb0
    tb = min(b_ceil, tb_target)
    b_pad = -(-B // tb) * tb
    num_blocks = b_pad // tb
    lb = tb * n_tj

    # Keep bf16 inputs as bf16 (cast after load inside the kernel); upcast others.
    work_dtype = jnp.bfloat16 if pred_pose.dtype == jnp.bfloat16 else jnp.float32
    pred = pred_pose.reshape(B, T, J, C).astype(work_dtype)
    true = future_pose.reshape(B, T, J, C).astype(work_dtype)
    if b_pad != B:
        pad = ((0, b_pad - B), (0, 0), (0, 0), (0, 0))
        pred = jnp.pad(pred, pad)      # padded rows: pred == true -> l == 0
        true = jnp.pad(true, pad)

    def to_lane_major(x):
        # (Bp, T, J, C) -> (num_blocks, C, TB*T*J); lane = b_local*T*J + t*J + j
        x = jnp.transpose(x, (0, 3, 1, 2)).reshape(b_pad, C, n_tj)
        x = x.reshape(num_blocks, tb, C, n_tj)
        x = jnp.transpose(x, (0, 2, 1, 3)).reshape(num_blocks, C, lb)
        return x

    pred_r = to_lane_major(pred)
    true_r = to_lane_major(true)
    w_tiled = jnp.tile(w.reshape(1, 1, n_tj), (1, 1, tb))   # (1, 1, LB)

    partials = pl.pallas_call(
        functools.partial(pua_block_kernel, n_coord=C, lanes_per_block=lb),
        out_shape=jax.ShapeDtypeStruct((num_blocks, _SUBLANES, _LANES), jnp.float32),
        grid=(num_blocks,),
        in_specs=[
            pl.BlockSpec((1, 1, lb), lambda i: (0, 0, 0)),
            pl.BlockSpec((1, C, lb), lambda i: (i, 0, 0)),
            pl.BlockSpec((1, C, lb), lambda i: (i, 0, 0)),
        ],
        out_specs=pl.BlockSpec((1, _SUBLANES, _LANES), lambda i: (i, 0, 0)),
        compiler_params=pltpu.CompilerParams(
            dimension_semantics=("parallel",)),
    )(w_tiled, pred_r, true_r)

    # mean(exp(-sigma)*l + sigma) = sum(exp(-sigma)*l)/(B*T*J) + mean_{t,j}(sigma)
    loss = jnp.sum(partials) / (B * T * J) + jnp.mean(sigma)
    return {"loss": loss}


def pua_loss_reference(pred_pose, future_pose, sigma_param, *, nT, nJ,
                       clip_min, clip_max):
    """Pure-JAX transcription of the PyTorch forward (correctness check; also the
    preferred implementation when B is small enough that launch overhead dominates)."""
    B, T, JC = pred_pose.shape
    C = JC // nJ
    s = sigma_param.reshape(1, 5, nJ).astype(jnp.float32)
    s1, s2, s3, s4, s5 = (s[:, k, :] for k in range(5))          # each (1, nJ)
    x = jnp.arange(nT, dtype=jnp.float32)[None, :, None]          # (1, nT, 1)
    c = 2.0 * s3 * s5 / jnp.abs(s3 + s5)
    f = 1.0 / (1.0 + jnp.exp(-c * (s4 - x)))
    g = jnp.exp(s3 * (s4 - x))
    h = jnp.exp(s5 * (s4 - x))
    sigma = s1 + s2 / (1.0 + f * g + (1.0 - f) * h)               # (1, nT, nJ)
    sigma = jnp.clip(sigma, clip_min, clip_max)
    pred = pred_pose.reshape(B, T, nJ, C).astype(jnp.float32)
    true = future_pose.reshape(B, T, nJ, C).astype(jnp.float32)
    l = jnp.sqrt(jnp.sum((pred - true) ** 2, axis=-1))            # (B, T, nJ)
    return jnp.mean(jnp.exp(-sigma) * l + sigma)


if __name__ == "__main__":
    # Small shapes consistent with the forward: B=2, nT=8 frames, nJ=4 joints,
    # C=3 coords per joint -> pred_pose / future_pose are (B, nT, nJ*C).
    B, T, J, C = 2, 8, 4, 3
    init_mean = 3.5
    clip_min, clip_max = -100.0, 100.0

    key = jax.random.PRNGKey(0)
    k1, k2, k3, k4, k5 = jax.random.split(key, 5)
    pred_pose = jax.random.normal(k1, (B, T, J * C), dtype=jnp.float32)
    future_pose = jax.random.normal(k2, (B, T, J * C), dtype=jnp.float32)

    # sigma parameter per PUALoss.__init__ for ('J' in tasks, time_prior='sig5'):
    # shape (1, 5, nJ), all zeros, row 0 = init_mean, row 2 = 1.0, plus a small
    # deterministic perturbation so the sig5 curve is non-trivial.
    sigma_param = jnp.zeros((1, 5, J), jnp.float32)
    sigma_param = sigma_param.at[:, 0, :].set(init_mean)
    sigma_param = sigma_param.at[:, 2, :].set(1.0)
    sigma_param = sigma_param + 0.05 * jax.random.normal(k3, (1, 5, J), dtype=jnp.float32)

    # TODO(synk): the 'A' (action) task uses a host-side string->index lookup +
    # nn.Embedding row gather; not representable inside a Pallas kernel, so this
    # script implements the tasks='TJ' configuration.

    out = pua_loss(pred_pose, future_pose, sigma_param, nT=T, nJ=J,
                   clip_min=clip_min, clip_max=clip_max)
    loss = jax.block_until_ready(out["loss"])
    ref = pua_loss_reference(pred_pose, future_pose, sigma_param, nT=T, nJ=J,
                             clip_min=clip_min, clip_max=clip_max)
    assert abs(float(loss) - float(ref)) < 2e-4, (float(loss), float(ref))

    # Exercise the multi-block ("parallel" grid) path with a larger batch.
    B2 = 70
    pred2 = jax.random.normal(k4, (B2, T, J * C), dtype=jnp.float32)
    future2 = jax.random.normal(k5, (B2, T, J * C), dtype=jnp.float32)
    out2 = pua_loss(pred2, future2, sigma_param, nT=T, nJ=J,
                    clip_min=clip_min, clip_max=clip_max, block_batch=32)
    loss2 = jax.block_until_ready(out2["loss"])
    ref2 = pua_loss_reference(pred2, future2, sigma_param, nT=T, nJ=J,
                              clip_min=clip_min, clip_max=clip_max)
    assert abs(float(loss2) - float(ref2)) < 2e-4, (float(loss2), float(ref2))

    print("KERNEL_OK")
</pallas_src>

<mosaic_0001>
module attributes {stable_mosaic.version = 11 : i64} {
  func.func @sig5_sigma_kernel(%arg0: memref<5x4xf32, #tpu.memory_space<vmem>>, %arg1: memref<8x4xf32, #tpu.memory_space<vmem>>, %arg2: memref<8x4xf32, #tpu.memory_space<vmem>>) attributes {dimension_semantics = [], scalar_prefetch = 0 : i64, scratch_operands = 0 : i64, tpu.core_type = #tpu.core_type<tc>} {
    %c0 = arith.constant 0 : index
    %c0_0 = arith.constant 0 : index
    %0 = vector.load %arg0[%c0, %c0_0] : memref<5x4xf32, #tpu.memory_space<vmem>>, vector<1x4xf32>
    %c1 = arith.constant 1 : index
    %c0_1 = arith.constant 0 : index
    %1 = vector.load %arg0[%c1, %c0_1] : memref<5x4xf32, #tpu.memory_space<vmem>>, vector<1x4xf32>
    %c2 = arith.constant 2 : index
    %c0_2 = arith.constant 0 : index
    %2 = vector.load %arg0[%c2, %c0_2] : memref<5x4xf32, #tpu.memory_space<vmem>>, vector<1x4xf32>
    %c3 = arith.constant 3 : index
    %c0_3 = arith.constant 0 : index
    %3 = vector.load %arg0[%c3, %c0_3] : memref<5x4xf32, #tpu.memory_space<vmem>>, vector<1x4xf32>
    %c4 = arith.constant 4 : index
    %c0_4 = arith.constant 0 : index
    %4 = vector.load %arg0[%c4, %c0_4] : memref<5x4xf32, #tpu.memory_space<vmem>>, vector<1x4xf32>
    %5 = tpu.iota {dimensions = array<i32: 0>} : vector<8x4xi32>
    %6 = arith.sitofp %5 : vector<8x4xi32> to vector<8x4xf32>
    %cst = arith.constant 2.000000e+00 : f32
    %7 = vector.broadcast %cst : f32 to vector<1x4xf32>
    %8 = arith.mulf %7, %2 : vector<1x4xf32>
    %9 = arith.mulf %8, %4 : vector<1x4xf32>
    %10 = arith.addf %2, %4 : vector<1x4xf32>
    %11 = math.absf %10 : vector<1x4xf32>
    %12 = arith.divf %9, %11 : vector<1x4xf32>
    %cst_5 = arith.constant 0.000000e+00 : f32
    %13 = vector.broadcast %cst_5 : f32 to vector<1x4xf32>
    %14 = arith.subf %13, %12 : vector<1x4xf32>
    %15 = vector.broadcast %3 : vector<1x4xf32> to vector<8x4xf32>
    %16 = arith.subf %15, %6 : vector<8x4xf32>
    %17 = vector.broadcast %14 : vector<1x4xf32> to vector<8x4xf32>
    %18 = arith.mulf %17, %16 : vector<8x4xf32>
    %19 = math.exp %18 : vector<8x4xf32>
    %cst_6 = arith.constant 1.000000e+00 : f32
    %20 = vector.broadcast %cst_6 : f32 to vector<8x4xf32>
    %21 = arith.addf %20, %19 : vector<8x4xf32>
    %cst_7 = arith.constant 1.000000e+00 : f32
    %22 = vector.broadcast %cst_7 : f32 to vector<8x4xf32>
    %23 = arith.divf %22, %21 : vector<8x4xf32>
    %24 = vector.broadcast %3 : vector<1x4xf32> to vector<8x4xf32>
    %25 = arith.subf %24, %6 : vector<8x4xf32>
    %26 = vector.broadcast %2 : vector<1x4xf32> to vector<8x4xf32>
    %27 = arith.mulf %26, %25 : vector<8x4xf32>
    %28 = math.exp %27 : vector<8x4xf32>
    %29 = vector.broadcast %3 : vector<1x4xf32> to vector<8x4xf32>
    %30 = arith.subf %29, %6 : vector<8x4xf32>
    %31 = vector.broadcast %4 : vector<1x4xf32> to vector<8x4xf32>
    %32 = arith.mulf %31, %30 : vector<8x4xf32>
    %33 = math.exp %32 : vector<8x4xf32>
    %34 = arith.mulf %23, %28 : vector<8x4xf32>
    %cst_8 = arith.constant 1.000000e+00 : f32
    %35 = vector.broadcast %cst_8 : f32 to vector<8x4xf32>
    %36 = arith.addf %35, %34 : vector<8x4xf32>
    %cst_9 = arith.constant 1.000000e+00 : f32
    %37 = vector.broadcast %cst_9 : f32 to vector<8x4xf32>
    %38 = arith.subf %37, %23 : vector<8x4xf32>
    %39 = arith.mulf %38, %33 : vector<8x4xf32>
    %40 = arith.addf %36, %39 : vector<8x4xf32>
    %41 = vector.broadcast %1 : vector<1x4xf32> to vector<8x4xf32>
    %42 = arith.divf %41, %40 : vector<8x4xf32>
    %43 = vector.broadcast %0 : vector<1x4xf32> to vector<8x4xf32>
    %44 = arith.addf %43, %42 : vector<8x4xf32>
    %cst_10 = arith.constant -1.000000e+02 : f32
    %cst_11 = arith.constant 1.000000e+02 : f32
    %45 = vector.broadcast %cst_10 : f32 to vector<8x4xf32>
    %46 = arith.maximumf %45, %44 : vector<8x4xf32>
    %47 = vector.broadcast %cst_11 : f32 to vector<8x4xf32>
    %48 = arith.minimumf %47, %46 : vector<8x4xf32>
    %c0_12 = arith.constant 0 : index
    %c0_13 = arith.constant 0 : index
    %49 = vector.load %arg1[%c0_12, %c0_13] : memref<8x4xf32, #tpu.memory_space<vmem>>, vector<8x4xf32>
    tpu.vector_store %arg1[%c0_12, %c0_13], %48 {strides = array<i32>} : memref<8x4xf32, #tpu.memory_space<vmem>>, vector<8x4xf32>,
    %cst_14 = arith.constant 0.000000e+00 : f32
    %50 = vector.broadcast %cst_14 : f32 to vector<8x4xf32>
    %51 = arith.subf %50, %48 : vector<8x4xf32>
    %52 = math.exp %51 : vector<8x4xf32>
    %c0_15 = arith.constant 0 : index
    %c0_16 = arith.constant 0 : index
    %53 = vector.load %arg2[%c0_15, %c0_16] : memref<8x4xf32, #tpu.memory_space<vmem>>, vector<8x4xf32>
    tpu.vector_store %arg2[%c0_15, %c0_16], %52 {strides = array<i32>} : memref<8x4xf32, #tpu.memory_space<vmem>>, vector<8x4xf32>,
    return
  }
}

</mosaic_0001>

<llo_original>
// kernel: tpu_custom_call.1
$region0: #{tpu_custom_call.1}
  #allocation0 [shape = 'u32[]', space=smem, size = 0x4, offset = 0x4, fixed_abs, tag = 'smem constant byte address 0x4 - core index']
  #allocation1 [shape = 'u32[144,128]{1,0:T(1,128)}', space=vmem, size = 0x12000, scoped, tag = 'internal scratch']
  %s0 = inlined_call_operand.vmem [shape: f32[5,4], index: 0, kind: input, shape index: {}]
  %s1 = inlined_call_operand.vmem [shape: f32[8,4], index: 1, kind: output, shape index: {0}]
  %s2 = inlined_call_operand.vmem [shape: f32[8,4], index: 2, kind: output, shape index: {1}]
  %3 = xla_tuple %s1, %s2
  %s4 = sld [smem:[#allocation0]]
  $region22: #{tpu_custom_call.1} parent=0
    _
  %s6 = ssub.s32 1, %s4
  %s7 = scalar_select 0, %s6, %s4
  // Predicated region
  $region2: #{tpu_custom_call.1} parent=0 // pred_check
    _
  $region3: #{tpu_custom_call.1} parent=0 // pred_check_branch
    %9 = sbr.rel (0) target = $region5
  $region4: #{tpu_custom_call.1} parent=0 // pred_region
    _
  $region5: #{tpu_custom_call.1} parent=0 // pred_fallthru
    _
  %v10 = vld [vmem:[%s0] sm:$0x1]
  %v11 = vld [vmem:[%s0 + $0x1] sm:$0x1]
  %v12 = vld [vmem:[%s0 + $0x2] sm:$0x1]
  %v13 = vld [vmem:[%s0 + $0x3] sm:$0x1]
  %v14 = vld [vmem:[%s0 + $0x4] sm:$0x1]
  %v15 = vlaneseq
  %v16 = vshrl.u32 %v15, 7
  %v17 = vcvt.s32.f32 %v16
  %v18 = vmul.f32 %v12, 2.0
  %v19 = vmul.f32 %v18, %v14
  %v20 = vadd.f32 %v12, %v14
  %v21 = vand.u32 2147483647, %v20
  %v22 = vrcp.pop %v21
  %v23 = vmul.f32 %v19, %v22
  %v24 = vsub.f32 0.0, %v23
  %v25 = vlaneseq
  %v26 = vshrl.u32 %v25, 7
  %v27 = vsub.s32 0, %v26
  %v28 = vrot.slane %v13, %v27
  %v29 = vsub.f32 %v28, %v17
  %v30 = vlaneseq
  %v31 = vshrl.u32 %v30, 7
  %v32 = vsub.s32 0, %v31
  %v33 = vrot.slane %v24, %v32
  %v34 = vmul.f32 %v33, %v29
  %v35 = vmul.f32 %v34, 1.442695
  %v36 = vpow.pop %v35
  %v37 = vadd.f32 %v36, 1.0
  %v38 = vrcp.pop %v37
  %v39 = vmul.f32 1.0, %v38
  %v40 = vlaneseq
  %v41 = vshrl.u32 %v40, 7
  %v42 = vsub.s32 0, %v41
  %v43 = vrot.slane %v12, %v42
  %v44 = vmul.f32 %v43, %v29
  %v45 = vmul.f32 %v44, 1.442695
  %v46 = vpow.pop %v45
  %v47 = vlaneseq
  %v48 = vshrl.u32 %v47, 7
  %v49 = vsub.s32 0, %v48
  %v50 = vrot.slane %v14, %v49
  %v51 = vmul.f32 %v50, %v29
  %v52 = vmul.f32 %v51, 1.442695
  %v53 = vpow.pop %v52
  %v54 = vmul.f32 %v39, %v46
  %v55 = vadd.f32 %v54, 1.0
  %v56 = vsub.f32 1.0, %v39
  %v57 = vmul.f32 %v56, %v53
  %v58 = vadd.f32 %v55, %v57
  %v59 = vlaneseq
  %v60 = vshrl.u32 %v59, 7
  %v61 = vsub.s32 0, %v60
  %v62 = vrot.slane %v11, %v61
  %v63 = vrcp.pop %v58
  %v64 = vmul.f32 %v62, %v63
  %v65 = vlaneseq
  %v66 = vshrl.u32 %v65, 7
  %v67 = vsub.s32 0, %v66
  %v68 = vrot.slane %v10, %v67
  %v69 = vadd.f32 %v68, %v64
  %v70 = vmax.f32 %v69, -100.0
  %v71 = vmin.f32 %v70, 100.0
  %vm72 = vcmask 31744
  %73 = vst.msk [vmem:[%s1] sm:$0xff] %vm72, %v71
  %v74 = vsub.f32 0.0, %v71
  %v75 = vmul.f32 %v74, 1.442695
  %v76 = vpow.pop %v75
  %77 = vst.msk [vmem:[%s2] sm:$0xff] %vm72, %v76
  // Predicated region
  $region6: #{tpu_custom_call.1} parent=0 // pred_check
    _
  $region7: #{tpu_custom_call.1} parent=0 // pred_check_branch
    %79 = sbr.rel (0) target = $region9
  $region8: #{tpu_custom_call.1} parent=0 // pred_region
    _
  $region9: #{tpu_custom_call.1} parent=0 // pred_fallthru
    _
  // Predicated region
  $region10: #{tpu_custom_call.1} parent=0 // pred_check
    _
  $region11: #{tpu_custom_call.1} parent=0 // pred_check_branch
    %81 = sbr.rel (0) target = $region13
  $region12: #{tpu_custom_call.1} parent=0 // pred_region
    _
  $region13: #{tpu_custom_call.1} parent=0 // pred_fallthru
    _
  // Predicated region
  $region14: #{tpu_custom_call.1} parent=0 // pred_check
    _
  $region15: #{tpu_custom_call.1} parent=0 // pred_check_branch
    %83 = sbr.rel (0) target = $region17
  $region16: #{tpu_custom_call.1} parent=0 // pred_region
    _
  $region17: #{tpu_custom_call.1} parent=0 // pred_fallthru
    _
  // Predicated region
  $region18: #{tpu_custom_call.1} parent=0 // pred_check
    _
  $region19: #{tpu_custom_call.1} parent=0 // pred_check_branch
    %85 = sbr.rel (0) target = $region21
  $region20: #{tpu_custom_call.1} parent=0 // pred_region
    _
  $region21: #{tpu_custom_call.1} parent=0 // pred_fallthru
    _

</llo_original>
